<compile_context>
chip_gen: v7x
topology: tpu7x:2x2x1
jax: 0.10.0
libtpu: 0.0.40
codegen_flags: <defaults>
</compile_context>

<pallas_src>
import functools
import math

import jax
import jax.numpy as jnp
from jax.experimental import pallas as pl
from jax.experimental.pallas import tpu as pltpu

_LANES = 512           # lane-dense last dim (multiple of 128)
_MAX_TILE_ROWS = 512   # (512, 512) f32 tile = 1 MiB -> ~4 MiB of input double-buffers
_NUM_SLICES = 2        # leading "parallel" grid axis (v7x has 2 TensorCores)


def _cdiv(a, b):
    return -(-a // b)


def _wce_sums_kernel(pred_ref, gt_ref, acc_ref, *, n_tiles, tile_rows, lanes,
                     total, need_mask):
    i = pl.program_id(1)

    @pl.when(i == 0)
    def _():
        acc_ref[...] = jnp.zeros_like(acc_ref)

    x = pred_ref[...].astype(jnp.float32)
    y = gt_ref[...].astype(jnp.float32)

    # numerically stable softplus(-x) = -log(sigmoid(x))
    sp = jnp.log1p(jnp.exp(-jnp.abs(x))) + jnp.maximum(-x, 0.0)

    t1 = (1.0 - y) * x          # -> S1
    t2 = sp                     # -> S2
    t3 = y * sp                 # -> S3
    t4 = y                      # -> S4

    if need_mask:
        # Zero padding makes t1/t3/t4 exactly 0 in the tail, but
        # softplus(0) = ln 2 pollutes S2 -> mask it by global element index.
        p = pl.program_id(0)
        row0 = (p * n_tiles + i) * tile_rows
        r = jax.lax.broadcasted_iota(jnp.int32, (tile_rows, lanes), 0) + row0
        c = jax.lax.broadcasted_iota(jnp.int32, (tile_rows, lanes), 1)
        full_rows = total // lanes
        rem = total % lanes
        valid = (r < full_rows) | ((r == full_rows) & (c < rem))
        t2 = jnp.where(valid, t2, 0.0)

    # (tile_rows, lanes) -> (8, lanes) partial reduce. The reshape only splits
    # the sublane axis on an 8-row (vreg tile) boundary, so the axis-0 sum is
    # vreg-wise VPU adds that co-issue under the DMA (no XLU reduction trees).
    def partial(t):
        return jnp.sum(t.reshape(tile_rows // 8, 8, lanes), axis=0)

    acc_ref[0] += partial(t1)
    acc_ref[1] += partial(t2)
    acc_ref[2] += partial(t3)
    acc_ref[3] += partial(t4)


def weighted_ce_loss(pred, gt, epsilon=1e-10):
    """Pallas implementation of WeightedCELoss.forward (pred.shape == gt.shape)."""
    # TODO(synk): bilinear interpolation (align_corners=True) when pred/gt
    # spatial shapes differ; here we implement the common matching-shape path.
    assert pred.shape == gt.shape, "shape-mismatch path (F.interpolate) not implemented"

    total = int(math.prod(pred.shape))
    lanes = _LANES

    rows = _cdiv(total, lanes)
    tile_rows = min(_MAX_TILE_ROWS, _cdiv(_cdiv(rows, _NUM_SLICES), 8) * 8)
    n_tiles = _cdiv(_cdiv(rows, tile_rows), _NUM_SLICES)  # tiles per parallel slice
    rows_padded = _NUM_SLICES * n_tiles * tile_rows
    pad = rows_padded * lanes - total
    need_mask = pad > 0

    # Lane-dense 2-D slab; keep the native dtype and cast inside the kernel
    # (avoids materializing an f32 copy in HBM for bf16/int inputs).
    pred_flat = pred.reshape(-1)
    gt_flat = gt.reshape(-1)
    if pad > 0:
        pred_flat = jnp.pad(pred_flat, (0, pad))
        gt_flat = jnp.pad(gt_flat, (0, pad))
    pred2 = pred_flat.reshape(rows_padded, lanes)
    gt2 = gt_flat.reshape(rows_padded, lanes)

    kernel = functools.partial(
        _wce_sums_kernel, n_tiles=n_tiles, tile_rows=tile_rows, lanes=lanes,
        total=total, need_mask=need_mask)

    in_spec = pl.BlockSpec((tile_rows, lanes), lambda p, i: (p * n_tiles + i, 0))
    out_spec = pl.BlockSpec((None, 4, 8, lanes), lambda p, i: (p, 0, 0, 0))

    out_bytes = _NUM_SLICES * 4 * 8 * lanes * 4
    bytes_accessed = int(pred2.size * pred2.dtype.itemsize
                         + gt2.size * gt2.dtype.itemsize + out_bytes)

    partials = pl.pallas_call(
        kernel,
        out_shape=jax.ShapeDtypeStruct((_NUM_SLICES, 4, 8, lanes), jnp.float32),
        grid_spec=pltpu.PrefetchScalarGridSpec(
            num_scalar_prefetch=0,
            grid=(_NUM_SLICES, n_tiles),
            in_specs=[in_spec, in_spec],
            out_specs=out_spec,
        ),
        compiler_params=pltpu.CompilerParams(
            dimension_semantics=("parallel", "arbitrary")),
        cost_estimate=pl.CostEstimate(
            flops=10 * total, transcendentals=2 * total,
            bytes_accessed=bytes_accessed),
    )(pred2, gt2)

    sums = jnp.sum(partials, axis=(0, 2, 3))   # tiny (4,) final reduce in JAX
    s1, s2, s3, s4 = sums[0], sums[1], sums[2], sums[3]

    total_f = jnp.float32(total)
    count_pos = s4 + epsilon
    # sum(1 - y) == total - sum(y) exactly (holds for any y, binary or not).
    count_neg = (total_f - s4) + epsilon
    beta = count_neg / count_pos
    beta_back = count_pos / (count_pos + count_neg)

    # BCEWithLogitsLoss(pos_weight=beta) per element (stable form):
    #   (1-y)*x + (1 + (beta-1)*y) * softplus(-x)
    mean_bce = (s1 + s2 + (beta - 1.0) * s3) / total_f
    return beta_back * mean_bce


def _reference_loss(pred, gt, epsilon=1e-10):
    """Pure-JAX reference mirroring the PyTorch module."""
    x = pred.astype(jnp.float32)
    y = gt.astype(jnp.float32)
    count_pos = jnp.sum(y) + epsilon
    count_neg = jnp.sum(1.0 - y) + epsilon
    beta = count_neg / count_pos
    beta_back = count_pos / (count_pos + count_neg)
    sp = jnp.log1p(jnp.exp(-jnp.abs(x))) + jnp.maximum(-x, 0.0)
    per_elem = (1.0 - y) * x + (1.0 + (beta - 1.0) * y) * sp
    return beta_back * jnp.mean(per_elem)


if __name__ == "__main__":
    key = jax.random.PRNGKey(0)
    k1, k2 = jax.random.split(key)

    # NCHW logits + binary ground truth (typical saliency/segmentation setup).
    pred = jax.random.normal(k1, (2, 4, 16, 16), dtype=jnp.float32) * 2.0
    gt = (jax.random.uniform(k2, (2, 4, 16, 16), dtype=jnp.float32) > 0.7).astype(
        jnp.float32)

    loss = jax.block_until_ready(weighted_ce_loss(pred, gt))
    ref = jax.block_until_ready(_reference_loss(pred, gt))
    assert jnp.allclose(loss, ref, rtol=1e-5, atol=1e-6), (loss, ref)

    print("KERNEL_OK")
</pallas_src>

<mosaic_0001>
module attributes {stable_mosaic.version = 11 : i64} {
  func.func @_wce_sums_kernel(%arg0: i32, %arg1: i32, %arg2: memref<8x512xf32, #tpu.memory_space<vmem>>, %arg3: memref<8x512xf32, #tpu.memory_space<vmem>>, %arg4: memref<1x4x8x512xf32, #tpu.memory_space<vmem>>) attributes {dimension_semantics = [#tpu.dimension_semantics<parallel>, #tpu.dimension_semantics<arbitrary>], iteration_bounds = array<i64: 2, 1>, scalar_prefetch = 0 : i64, scratch_operands = 0 : i64, tpu.core_type = #tpu.core_type<tc>, window_params = [{transform_indices = @transform_0, window_bounds = array<i64: 8, 512>}, {transform_indices = @transform_1, window_bounds = array<i64: 8, 512>}, {transform_indices = @transform_2, window_bounds = array<i64: 1, 4, 8, 512>}]} {
    %c0_i32 = arith.constant 0 : i32
    %0 = arith.cmpi eq, %arg1, %c0_i32 : i32
    %1 = arith.extui %0 : i1 to i32
    %c0_i32_0 = arith.constant 0 : i32
    %2 = arith.cmpi ne, %1, %c0_i32_0 : i32
    scf.if %2 {
      %cst_43 = arith.constant 0.000000e+00 : f32
      %68 = vector.broadcast %cst_43 : f32 to vector<4x8x512xf32>
      %c0_44 = arith.constant 0 : index
      %c0_45 = arith.constant 0 : index
      %c0_46 = arith.constant 0 : index
      %c0_47 = arith.constant 0 : index
      %69 = vector.load %arg4[%c0_44, %c0_45, %c0_46, %c0_47] : memref<1x4x8x512xf32, #tpu.memory_space<vmem>>, vector<1x4x8x512xf32>
      %70 = vector.shape_cast %69 : vector<1x4x8x512xf32> to vector<4x8x512xf32>
      %71 = vector.shape_cast %68 : vector<4x8x512xf32> to vector<1x4x8x512xf32>
      tpu.vector_store %arg4[%c0_44, %c0_45, %c0_46, %c0_47], %71 {strides = array<i32>} : memref<1x4x8x512xf32, #tpu.memory_space<vmem>>, vector<1x4x8x512xf32>,
    } else {
    }
    %c0 = arith.constant 0 : index
    %c0_1 = arith.constant 0 : index
    %3 = vector.load %arg2[%c0, %c0_1] : memref<8x512xf32, #tpu.memory_space<vmem>>, vector<8x512xf32>
    %c0_2 = arith.constant 0 : index
    %c0_3 = arith.constant 0 : index
    %4 = vector.load %arg3[%c0_2, %c0_3] : memref<8x512xf32, #tpu.memory_space<vmem>>, vector<8x512xf32>
    %5 = math.absf %3 : vector<8x512xf32>
    %cst = arith.constant 0.000000e+00 : f32
    %6 = vector.broadcast %cst : f32 to vector<8x512xf32>
    %7 = arith.subf %6, %5 : vector<8x512xf32>
    %8 = math.exp %7 : vector<8x512xf32>
    %9 = math.log1p %8 : vector<8x512xf32>
    %cst_4 = arith.constant 0.000000e+00 : f32
    %10 = vector.broadcast %cst_4 : f32 to vector<8x512xf32>
    %11 = arith.subf %10, %3 : vector<8x512xf32>
    %cst_5 = arith.constant 0.000000e+00 : f32
    %12 = vector.broadcast %cst_5 : f32 to vector<8x512xf32>
    %13 = arith.maximumf %11, %12 : vector<8x512xf32>
    %14 = arith.addf %9, %13 : vector<8x512xf32>
    %cst_6 = arith.constant 1.000000e+00 : f32
    %15 = vector.broadcast %cst_6 : f32 to vector<8x512xf32>
    %16 = arith.subf %15, %4 : vector<8x512xf32>
    %17 = arith.mulf %16, %3 : vector<8x512xf32>
    %18 = arith.mulf %4, %14 : vector<8x512xf32>
    %c1_i32 = arith.constant 1 : i32
    %19 = arith.muli %arg0, %c1_i32 : i32
    %20 = arith.addi %19, %arg1 : i32
    %c8_i32 = arith.constant 8 : i32
    %21 = arith.muli %20, %c8_i32 : i32
    %22 = tpu.iota {dimensions = array<i32: 0>} : vector<8x512xi32>
    %23 = vector.broadcast %21 : i32 to vector<8x512xi32>
    %24 = arith.addi %22, %23 : vector<8x512xi32>
    %25 = tpu.iota {dimensions = array<i32: 1>} : vector<8x512xi32>
    %c4_i32 = arith.constant 4 : i32
    %26 = vector.broadcast %c4_i32 : i32 to vector<8x512xi32>
    %27 = arith.cmpi slt, %24, %26 : vector<8x512xi32>
    %c4_i32_7 = arith.constant 4 : i32
    %28 = vector.broadcast %c4_i32_7 : i32 to vector<8x512xi32>
    %29 = arith.cmpi eq, %24, %28 : vector<8x512xi32>
    %c0_i32_8 = arith.constant 0 : i32
    %30 = vector.broadcast %c0_i32_8 : i32 to vector<8x512xi32>
    %31 = arith.cmpi slt, %25, %30 : vector<8x512xi32>
    %32 = arith.andi %29, %31 : vector<8x512xi1>
    %33 = arith.ori %27, %32 : vector<8x512xi1>
    %cst_9 = arith.constant 0.000000e+00 : f32
    %34 = vector.broadcast %cst_9 : f32 to vector<8x512xf32>
    %35 = arith.select %33, %14, %34 : vector<8x512xi1>, vector<8x512xf32>
    %c0_10 = arith.constant 0 : index
    %c0_11 = arith.constant 0 : index
    %c0_12 = arith.constant 0 : index
    %c0_13 = arith.constant 0 : index
    %36 = vector.load %arg4[%c0_10, %c0_11, %c0_12, %c0_13] : memref<1x4x8x512xf32, #tpu.memory_space<vmem>>, vector<1x1x8x512xf32>
    %37 = vector.shape_cast %36 : vector<1x1x8x512xf32> to vector<8x512xf32>
    %38 = vector.shape_cast %17 : vector<8x512xf32> to vector<1x8x512xf32>
    %cst_14 = arith.constant dense<0.000000e+00> : vector<8x512xf32>
    %39 = vector.multi_reduction <add>, %38, %cst_14 [0] : vector<1x8x512xf32> to vector<8x512xf32>
    %40 = arith.addf %37, %39 : vector<8x512xf32>
    %c0_15 = arith.constant 0 : index
    %c0_16 = arith.constant 0 : index
    %c0_17 = arith.constant 0 : index
    %c0_18 = arith.constant 0 : index
    %41 = vector.load %arg4[%c0_15, %c0_16, %c0_17, %c0_18] : memref<1x4x8x512xf32, #tpu.memory_space<vmem>>, vector<1x1x8x512xf32>
    %42 = vector.shape_cast %41 : vector<1x1x8x512xf32> to vector<8x512xf32>
    %43 = vector.shape_cast %40 : vector<8x512xf32> to vector<1x1x8x512xf32>
    tpu.vector_store %arg4[%c0_15, %c0_16, %c0_17, %c0_18], %43 {strides = array<i32>} : memref<1x4x8x512xf32, #tpu.memory_space<vmem>>, vector<1x1x8x512xf32>,
    %c0_19 = arith.constant 0 : index
    %c1 = arith.constant 1 : index
    %c0_20 = arith.constant 0 : index
    %c0_21 = arith.constant 0 : index
    %44 = vector.load %arg4[%c0_19, %c1, %c0_20, %c0_21] : memref<1x4x8x512xf32, #tpu.memory_space<vmem>>, vector<1x1x8x512xf32>
    %45 = vector.shape_cast %44 : vector<1x1x8x512xf32> to vector<8x512xf32>
    %46 = vector.shape_cast %35 : vector<8x512xf32> to vector<1x8x512xf32>
    %cst_22 = arith.constant dense<0.000000e+00> : vector<8x512xf32>
    %47 = vector.multi_reduction <add>, %46, %cst_22 [0] : vector<1x8x512xf32> to vector<8x512xf32>
    %48 = arith.addf %45, %47 : vector<8x512xf32>
    %c0_23 = arith.constant 0 : index
    %c1_24 = arith.constant 1 : index
    %c0_25 = arith.constant 0 : index
    %c0_26 = arith.constant 0 : index
    %49 = vector.load %arg4[%c0_23, %c1_24, %c0_25, %c0_26] : memref<1x4x8x512xf32, #tpu.memory_space<vmem>>, vector<1x1x8x512xf32>
    %50 = vector.shape_cast %49 : vector<1x1x8x512xf32> to vector<8x512xf32>
    %51 = vector.shape_cast %48 : vector<8x512xf32> to vector<1x1x8x512xf32>
    tpu.vector_store %arg4[%c0_23, %c1_24, %c0_25, %c0_26], %51 {strides = array<i32>} : memref<1x4x8x512xf32, #tpu.memory_space<vmem>>, vector<1x1x8x512xf32>,
    %c0_27 = arith.constant 0 : index
    %c2 = arith.constant 2 : index
    %c0_28 = arith.constant 0 : index
    %c0_29 = arith.constant 0 : index
    %52 = vector.load %arg4[%c0_27, %c2, %c0_28, %c0_29] : memref<1x4x8x512xf32, #tpu.memory_space<vmem>>, vector<1x1x8x512xf32>
    %53 = vector.shape_cast %52 : vector<1x1x8x512xf32> to vector<8x512xf32>
    %54 = vector.shape_cast %18 : vector<8x512xf32> to vector<1x8x512xf32>
    %cst_30 = arith.constant dense<0.000000e+00> : vector<8x512xf32>
    %55 = vector.multi_reduction <add>, %54, %cst_30 [0] : vector<1x8x512xf32> to vector<8x512xf32>
    %56 = arith.addf %53, %55 : vector<8x512xf32>
    %c0_31 = arith.constant 0 : index
    %c2_32 = arith.constant 2 : index
    %c0_33 = arith.constant 0 : index
    %c0_34 = arith.constant 0 : index
    %57 = vector.load %arg4[%c0_31, %c2_32, %c0_33, %c0_34] : memref<1x4x8x512xf32, #tpu.memory_space<vmem>>, vector<1x1x8x512xf32>
    %58 = vector.shape_cast %57 : vector<1x1x8x512xf32> to vector<8x512xf32>
    %59 = vector.shape_cast %56 : vector<8x512xf32> to vector<1x1x8x512xf32>
    tpu.vector_store %arg4[%c0_31, %c2_32, %c0_33, %c0_34], %59 {strides = array<i32>} : memref<1x4x8x512xf32, #tpu.memory_space<vmem>>, vector<1x1x8x512xf32>,
    %c0_35 = arith.constant 0 : index
    %c3 = arith.constant 3 : index
    %c0_36 = arith.constant 0 : index
    %c0_37 = arith.constant 0 : index
    %60 = vector.load %arg4[%c0_35, %c3, %c0_36, %c0_37] : memref<1x4x8x512xf32, #tpu.memory_space<vmem>>, vector<1x1x8x512xf32>
    %61 = vector.shape_cast %60 : vector<1x1x8x512xf32> to vector<8x512xf32>
    %62 = vector.shape_cast %4 : vector<8x512xf32> to vector<1x8x512xf32>
    %cst_38 = arith.constant dense<0.000000e+00> : vector<8x512xf32>
    %63 = vector.multi_reduction <add>, %62, %cst_38 [0] : vector<1x8x512xf32> to vector<8x512xf32>
    %64 = arith.addf %61, %63 : vector<8x512xf32>
    %c0_39 = arith.constant 0 : index
    %c3_40 = arith.constant 3 : index
    %c0_41 = arith.constant 0 : index
    %c0_42 = arith.constant 0 : index
    %65 = vector.load %arg4[%c0_39, %c3_40, %c0_41, %c0_42] : memref<1x4x8x512xf32, #tpu.memory_space<vmem>>, vector<1x1x8x512xf32>
    %66 = vector.shape_cast %65 : vector<1x1x8x512xf32> to vector<8x512xf32>
    %67 = vector.shape_cast %64 : vector<8x512xf32> to vector<1x1x8x512xf32>
    tpu.vector_store %arg4[%c0_39, %c3_40, %c0_41, %c0_42], %67 {strides = array<i32>} : memref<1x4x8x512xf32, #tpu.memory_space<vmem>>, vector<1x1x8x512xf32>,
    return
  }
  func.func @transform_0(%arg0: i32, %arg1: i32) -> (i32, i32) {
    %c1_i32 = arith.constant 1 : i32
    %0 = arith.muli %arg0, %c1_i32 : i32
    %1 = arith.addi %0, %arg1 : i32
    %c0_i32 = arith.constant 0 : i32
    %c0_i32_0 = arith.constant 0 : i32
    return %1, %c0_i32 : i32, i32
  }
  func.func @transform_1(%arg0: i32, %arg1: i32) -> (i32, i32) {
    %c1_i32 = arith.constant 1 : i32
    %0 = arith.muli %arg0, %c1_i32 : i32
    %1 = arith.addi %0, %arg1 : i32
    %c0_i32 = arith.constant 0 : i32
    %c0_i32_0 = arith.constant 0 : i32
    return %1, %c0_i32 : i32, i32
  }
  func.func @transform_2(%arg0: i32, %arg1: i32) -> (i32, i32, i32, i32) {
    %c0_i32 = arith.constant 0 : i32
    %c0_i32_0 = arith.constant 0 : i32
    %c0_i32_1 = arith.constant 0 : i32
    %c0_i32_2 = arith.constant 0 : i32
    return %arg0, %c0_i32, %c0_i32_0, %c0_i32_1 : i32, i32, i32, i32
  }
}

</mosaic_0001>

<llo_original>
// kernel: tpu_custom_call.1
$region0: #{tpu_custom_call.1}
  #allocation0 [shape = 'u32[]', space=smem, size = 0x4, offset = 0x4, fixed_abs, tag = 'smem constant byte address 0x4 - core index']
  #allocation1 [shape = 'u32[144,128]{1,0:T(1,128)}', space=vmem, size = 0x12000, scoped, tag = 'internal scratch']
  %s0 = inlined_call_operand.hbm [shape: f32[16,512], index: 0, kind: input, shape index: {}]
  %s1 = inlined_call_operand.hbm [shape: f32[16,512], index: 1, kind: input, shape index: {}]
  %s2 = inlined_call_operand.hbm [shape: f32[2,4,8,512], index: 2, kind: output, shape index: {}]
  %s3 = sld [smem:[#allocation0]]
  $region53: #{tpu_custom_call.1} parent=0
    _
  %s5 = ssub.s32 1, %s3
  %s6 = scalar_select 0, %s5, %s3
  $region1: #{tpu_custom_call.1} parent=0
    #allocation2 [shape = 'u8[32768]{0}', space=vmem, size = 0x8000, scoped, tag = 'input window, operand 0']
    #allocation3 [shape = 's32[2]{0}', space=sflag, size = 0x8, scoped, tag = 'scoped memory for tpu_custom_call.1']
    #allocation4 [shape = 's32[2]{0}', space=sflag, size = 0x8, scoped, tag = 'scoped memory for tpu_custom_call.1']
    #allocation5 [shape = 'u8[32768]{0}', space=vmem, size = 0x8000, scoped, tag = 'input window, operand 1']
    #allocation6 [shape = 's32[2]{0}', space=sflag, size = 0x8, scoped, tag = 'scoped memory for tpu_custom_call.1']
    #allocation7 [shape = 'u8[131072]{0}', space=vmem, size = 0x20000, scoped, tag = 'output window, operand 0']
    %7 = vsyncpa [#allocation3], 0
    %s8 = scalar_lea.sflag [#allocation3], 1
    %9 = vsyncpa %s8, 0
    %10 = vsyncpa [#allocation6], 0
    %s11 = scalar_lea.sflag [#allocation6], 1
    %12 = vsyncpa %s11, 0
    %13 = vsyncpa [#allocation4], 0
    %s14 = scalar_lea.sflag [#allocation4], 1
    %15 = vsyncpa %s14, 0
    loop: start=0, step=1, limit=4
    $region2: #{tpu_custom_call.1} parent=1 // loop_pre_header
      _
    $region3: #{tpu_custom_call.1} parent=1 // loop_header
      %s17 = sphi 0, %s21
      %p18 = scmp.ge.s32.totalorder %s17, 4
      %s24 = sphi 0, %s36
      %s25 = sphi 0, %s32
      %s26 = sphi 0, %s24
      %s27 = sphi 0, %s25
      %s28 = sphi 0, %s26
      %s29 = sphi 0, %s27
      %s41 = sphi 0, %s43
      %s44 = sphi 0, %s41
      %s45 = sphi 0, %s44
      %s61 = sphi 0, %s45
      %s69 = sphi 0, %s71
      %s72 = sphi 0, %s69
      %s73 = sphi 0, %s72
      %s89 = sphi 0, %s73
      %s95 = sphi 0, %s97
      %s98 = sphi 0, %s95
      %s99 = sphi 0, %s98
      %s115 = sphi 0, %s99
    $region4: #{tpu_custom_call.1} parent=1 // loop_header_branch
      %20 = sbr.rel (%p18) target = $region8
    $region5: #{tpu_custom_call.1} parent=1 // loop_body
      %s22 = ssub.s32 %s17, 1
      %s23 = ssub.s32 %s17, 2
      %s30 = sadd.s32 1, %s25
      %p31 = scmp.ge.s32.totalorder %s30, 1
      %s32 = scalar_select %p31, 0, %s30
      %s33 = sadd.s32 1, %s24
      %s34 = scalar_select %p31, %s33, %s24
      %p35 = scmp.ge.s32.totalorder %s34, 2
      %s36 = scalar_select %p35, 0, %s34
      %s37 = sadd.s32 %s24, %s25
      %s38 = sadd.s32 %s36, %s32
      %s39 = ssub.s32 %s37, %s38
      %p40 = scmp.eq.s32.totalorder %s39, 0
      %s42 = sadd.s32 %s41, 1
      %s43 = scalar_select %p40, %s41, %s42
      %p46 = pneg %p40
      %p47 = scmp.eq.s32.totalorder %s17, 1
      %p48 = por %p46, %p47
      %p49 = scmp.ne.s32.totalorder %s41, %s44
      %p50 = scmp.eq.s32.totalorder %s17, 0
      %p51 = por %p49, %p50
      %p52 = scmp.ne.s32.totalorder %s41, %s44
      %p53 = scmp.eq.s32.totalorder %s22, 1
      %p54 = por %p52, %p53
      %p55 = scmp.ne.s32.totalorder %s44, %s45
      %p56 = scmp.eq.s32.totalorder %s22, 0
      %p57 = por %p55, %p56
      %p58 = scmp.ne.s32.totalorder %s44, %s45
      %p59 = scmp.eq.s32.totalorder %s23, 1
      %p60 = por %p58, %p59
      %p62 = scmp.ne.s32.totalorder %s45, %s61
      %p63 = scmp.eq.s32.totalorder %s23, 0
      %p64 = por %p62, %p63
      %s65 = sadd.s32 %s24, %s25
      %s66 = sadd.s32 %s36, %s32
      %s67 = ssub.s32 %s65, %s66
      %p68 = scmp.eq.s32.totalorder %s67, 0
      %s70 = sadd.s32 %s69, 1
      %s71 = scalar_select %p68, %s69, %s70
      %p74 = pneg %p68
      %p75 = scmp.eq.s32.totalorder %s17, 1
      %p76 = por %p74, %p75
      %p77 = scmp.ne.s32.totalorder %s69, %s72
      %p78 = scmp.eq.s32.totalorder %s17, 0
      %p79 = por %p77, %p78
      %p80 = scmp.ne.s32.totalorder %s69, %s72
      %p81 = scmp.eq.s32.totalorder %s22, 1
      %p82 = por %p80, %p81
      %p83 = scmp.ne.s32.totalorder %s72, %s73
      %p84 = scmp.eq.s32.totalorder %s22, 0
      %p85 = por %p83, %p84
      %p86 = scmp.ne.s32.totalorder %s72, %s73
      %p87 = scmp.eq.s32.totalorder %s23, 1
      %p88 = por %p86, %p87
      %p90 = scmp.ne.s32.totalorder %s73, %s89
      %p91 = scmp.eq.s32.totalorder %s23, 0
      %p92 = por %p90, %p91
      %s93 = ssub.s32 %s24, %s36
      %p94 = scmp.eq.s32.totalorder %s93, 0
      %s96 = sadd.s32 %s95, 1
      %s97 = scalar_select %p94, %s95, %s96
      %p100 = pneg %p94
      %p101 = scmp.eq.s32.totalorder %s17, 1
      %p102 = por %p100, %p101
      %p103 = scmp.ne.s32.totalorder %s95, %s98
      %p104 = scmp.eq.s32.totalorder %s17, 0
      %p105 = por %p103, %p104
      %p106 = scmp.ne.s32.totalorder %s95, %s98
      %p107 = scmp.eq.s32.totalorder %s22, 1
      %p108 = por %p106, %p107
      %p109 = scmp.ne.s32.totalorder %s98, %s99
      %p110 = scmp.eq.s32.totalorder %s22, 0
      %p111 = por %p109, %p110
      %p112 = scmp.ne.s32.totalorder %s98, %s99
      %p113 = scmp.eq.s32.totalorder %s23, 1
      %p114 = por %p112, %p113
      %p116 = scmp.ne.s32.totalorder %s99, %s115
      %p117 = scmp.eq.s32.totalorder %s23, 0
      %p118 = por %p116, %p117
      %p119 = scmp.le.s32.totalorder 1, %s17
      %p120 = scmp.lt.s32.totalorder %s17, 3
      %p121 = pnand %p119, %p120
      %p122 = pneg %p121
      // Predicated region
      $region9: #{tpu_custom_call.1} parent=5 // pred_check
        _
      $region10: #{tpu_custom_call.1} parent=5 // pred_check_branch
        %124 = sbr.rel (%p121) target = $region12
      $region11: #{tpu_custom_call.1} parent=5 // pred_region
        %s125 = ssub.s32 %s17, 1
      $region12: #{tpu_custom_call.1} parent=5 // pred_fallthru
        _
      %p126 = scmp.lt.s32.totalorder %s17, 2
      // Predicated region
      $region13: #{tpu_custom_call.1} parent=5 // pred_check
        %p127 = pneg %p126
      $region14: #{tpu_custom_call.1} parent=5 // pred_check_branch
        %129 = sbr.rel (%p127) target = $region16
      $region15: #{tpu_custom_call.1} parent=5 // pred_region
        // Predicated region
        $region17: #{tpu_custom_call.1} parent=15 // pred_check
          %p130 = pneg %p51
        $region18: #{tpu_custom_call.1} parent=15 // pred_check_branch
          %132 = sbr.rel (%p130) target = $region20
        $region19: #{tpu_custom_call.1} parent=15 // pred_region
          %s133 = sand.u32 %s41, 1
          %s134 = scalar_lea.sflag [#allocation3], %s133
          %s135 = sand.u32 %s41, 1
          %s136 = smul.addr %s135, 32
          %s137 = scalar_lea.vmem [#allocation2], %s136
          %s138 = sadd.s32 %s24, %s25
          %s140 = ssub.s32 512, 512
          %141 = vsyncadd %s134, %s140
          %s142 = smul.addr %s138, 4
          %s143 = smul.addr %s142, 128
          %s144 = scalar_lea.hbm %s0, %s143
          %s146 = sshll.u32 %s137, 4
          %s147 = int_to_ptr.vmem [resolvable:$true] %s146
          %149 = dma.hbm_to_vmem [thread:$0]  %s144, 512, %s147, %s134
        $region20: #{tpu_custom_call.1} parent=15 // pred_fallthru
          _
        // Predicated region
        $region21: #{tpu_custom_call.1} parent=15 // pred_check
          %p150 = pneg %p79
        $region22: #{tpu_custom_call.1} parent=15 // pred_check_branch
          %152 = sbr.rel (%p150) target = $region24
        $region23: #{tpu_custom_call.1} parent=15 // pred_region
          %s153 = sand.u32 %s69, 1
          %s154 = scalar_lea.sflag [#allocation6], %s153
          %s155 = sand.u32 %s69, 1
          %s156 = smul.addr %s155, 32
          %s157 = scalar_lea.vmem [#allocation5], %s156
          %s158 = sadd.s32 %s24, %s25
          %s160 = ssub.s32 512, 512
          %161 = vsyncadd %s154, %s160
          %s162 = smul.addr %s158, 4
          %s163 = smul.addr %s162, 128
          %s164 = scalar_lea.hbm %s1, %s163
          %s166 = sshll.u32 %s157, 4
          %s167 = int_to_ptr.vmem [resolvable:$true] %s166
          %169 = dma.hbm_to_vmem [thread:$0]  %s164, 512, %s167, %s154
        $region24: #{tpu_custom_call.1} parent=15 // pred_fallthru
          _
      $region16: #{tpu_custom_call.1} parent=5 // pred_fallthru
        _
      %p170 = scmp.le.s32.totalorder 1, %s17
      %p171 = scmp.lt.s32.totalorder %s17, 3
      %p172 = pnand %p170, %p171
      %p173 = pneg %p172
      // Predicated region
      $region25: #{tpu_custom_call.1} parent=5 // pred_check
        _
      $region26: #{tpu_custom_call.1} parent=5 // pred_check_branch
        %175 = sbr.rel (%p172) target = $region28
      $region27: #{tpu_custom_call.1} parent=5 // pred_region
        %s176 = ssub.s32 %s17, 1
        %s177 = sand.u32 %s44, 1
        %s178 = scalar_lea.sflag [#allocation3], %s177
        %s179 = sand.u32 %s44, 1
        %s180 = smul.addr %s179, 32
        %s181 = scalar_lea.vmem [#allocation2], %s180
        // Predicated region
        $region29: #{tpu_custom_call.1} parent=27 // pred_check
          %p182 = pneg %p57
        $region30: #{tpu_custom_call.1} parent=27 // pred_check_branch
          %184 = sbr.rel (%p182) target = $region32
        $region31: #{tpu_custom_call.1} parent=27 // pred_region
          %185 = dma.done %s178, 512
        $region32: #{tpu_custom_call.1} parent=27 // pred_fallthru
          _
        %s186 = sand.u32 %s72, 1
        %s187 = scalar_lea.sflag [#allocation6], %s186
        %s188 = sand.u32 %s72, 1
        %s189 = smul.addr %s188, 32
        %s190 = scalar_lea.vmem [#allocation5], %s189
        // Predicated region
        $region33: #{tpu_custom_call.1} parent=27 // pred_check
          %p191 = pneg %p85
        $region34: #{tpu_custom_call.1} parent=27 // pred_check_branch
          %193 = sbr.rel (%p191) target = $region36
        $region35: #{tpu_custom_call.1} parent=27 // pred_region
          %194 = dma.done %s187, 512
        $region36: #{tpu_custom_call.1} parent=27 // pred_fallthru
          _
        %s195 = sand.u32 %s44, 1
        %s196 = scalar_lea.sflag [#allocation3], %s195
        %s197 = sand.u32 %s44, 1
        %s198 = smul.addr %s197, 32
        %s199 = scalar_lea.vmem [#allocation2], %s198
        %p200 = pneg %p57
        %p201 = pneg %p54
        %s202 = sand.u32 %s72, 1
        %s203 = scalar_lea.sflag [#allocation6], %s202
        %s204 = sand.u32 %s72, 1
        %s205 = smul.addr %s204, 32
        %s206 = scalar_lea.vmem [#allocation5], %s205
        %p207 = pneg %p85
        %p208 = pneg %p82
        %p209 = pneg %p111
        %p210 = pneg %p108
        %s211 = sand.u32 %s98, 1
        %s212 = scalar_lea.sflag [#allocation4], %s211
        %s213 = sand.u32 %s98, 1
        %s214 = smul.addr %s213, 128
        %s215 = scalar_lea.vmem [#allocation7], %s214
        %s216 = sadd.s32 %s26, %s27
        %s217 = sadd.s32 %s26, %s27
        %p218 = scmp.eq.s32.totalorder %s27, 0
        // Predicated region
        $region37: #{tpu_custom_call.1} parent=27 // pred_check
          %p219 = pneg %p218
        $region38: #{tpu_custom_call.1} parent=27 // pred_check_branch
          %221 = sbr.rel (%p219) target = $region40
        $region39: #{tpu_custom_call.1} parent=27 // pred_region
          %222 = vst [vmem:[%s215] sm:$0xff] 0.0
          %223 = vst [vmem:[%s215 + $0x8] sm:$0xff] 0.0
          %224 = vst [vmem:[%s215 + $0x10] sm:$0xff] 0.0
          %225 = vst [vmem:[%s215 + $0x18] sm:$0xff] 0.0
          %226 = vst [vmem:[%s215 + $0x20] sm:$0xff] 0.0
          %227 = vst [vmem:[%s215 + $0x28] sm:$0xff] 0.0
          %228 = vst [vmem:[%s215 + $0x30] sm:$0xff] 0.0
          %229 = vst [vmem:[%s215 + $0x38] sm:$0xff] 0.0
          %230 = vst [vmem:[%s215 + $0x40] sm:$0xff] 0.0
          %231 = vst [vmem:[%s215 + $0x48] sm:$0xff] 0.0
          %232 = vst [vmem:[%s215 + $0x50] sm:$0xff] 0.0
          %233 = vst [vmem:[%s215 + $0x58] sm:$0xff] 0.0
          %234 = vst [vmem:[%s215 + $0x60] sm:$0xff] 0.0
          %235 = vst [vmem:[%s215 + $0x68] sm:$0xff] 0.0
          %236 = vst [vmem:[%s215 + $0x70] sm:$0xff] 0.0
          %237 = vst [vmem:[%s215 + $0x78] sm:$0xff] 0.0
        $region40: #{tpu_custom_call.1} parent=27 // pred_fallthru
          _
        %v238 = vld [vmem:[%s181] sm:$0xff]
        %v239 = vld [vmem:[%s181 + $0x8] sm:$0xff]
        %v240 = vld [vmem:[%s181 + $0x10] sm:$0xff]
        %v241 = vld [vmem:[%s181 + $0x18] sm:$0xff]
        %v242 = vld [vmem:[%s190] sm:$0xff]
        %v243 = vld [vmem:[%s190 + $0x8] sm:$0xff]
        %v244 = vld [vmem:[%s190 + $0x10] sm:$0xff]
        %v245 = vld [vmem:[%s190 + $0x18] sm:$0xff]
        %v246 = vand.u32 2147483647, %v238
        %v247 = vand.u32 2147483647, %v239
        %v248 = vand.u32 2147483647, %v240
        %v249 = vand.u32 2147483647, %v241
        %v250 = vsub.f32 0.0, %v246
        %v251 = vsub.f32 0.0, %v247
        %v252 = vsub.f32 0.0, %v248
        %v253 = vsub.f32 0.0, %v249
        %v254 = vmul.f32 %v250, 1.442695
        %v255 = vpow.pop %v254
        %v256 = vmul.f32 %v251, 1.442695
        %v257 = vpow.pop %v256
        %v258 = vmul.f32 %v252, 1.442695
        %v259 = vpow.pop %v258
        %v260 = vmul.f32 %v253, 1.442695
        %v261 = vpow.pop %v260
        %v262 = vadd.f32 %v255, 1.0
        %v263 = vlog2.pop %v262
        %v264 = vmul.f32 %v263, 0.6931472
        %v265 = vmul.f32 -0.5, %v255
        %v266 = vadd.f32 %v265, 1.0
        %v267 = vmul.f32 %v266, %v255
        %v268 = vand.u32 2147483647, %v255
        %vm269 = vcmp.lt.f32.partialorder %v268, 0.0004427343
        %v270 = vsel %vm269, %v267, %v264
        %v271 = vadd.f32 %v257, 1.0
        %v272 = vlog2.pop %v271
        %v273 = vmul.f32 %v272, 0.6931472
        %v274 = vmul.f32 -0.5, %v257
        %v275 = vadd.f32 %v274, 1.0
        %v276 = vmul.f32 %v275, %v257
        %v277 = vand.u32 2147483647, %v257
        %vm278 = vcmp.lt.f32.partialorder %v277, 0.0004427343
        %v279 = vsel %vm278, %v276, %v273
        %v280 = vadd.f32 %v259, 1.0
        %v281 = vlog2.pop %v280
        %v282 = vmul.f32 %v281, 0.6931472
        %v283 = vmul.f32 -0.5, %v259
        %v284 = vadd.f32 %v283, 1.0
        %v285 = vmul.f32 %v284, %v259
        %v286 = vand.u32 2147483647, %v259
        %vm287 = vcmp.lt.f32.partialorder %v286, 0.0004427343
        %v288 = vsel %vm287, %v285, %v282
        %v289 = vadd.f32 %v261, 1.0
        %v290 = vlog2.pop %v289
        %v291 = vmul.f32 %v290, 0.6931472
        %v292 = vmul.f32 -0.5, %v261
        %v293 = vadd.f32 %v292, 1.0
        %v294 = vmul.f32 %v293, %v261
        %v295 = vand.u32 2147483647, %v261
        %vm296 = vcmp.lt.f32.partialorder %v295, 0.0004427343
        %v297 = vsel %vm296, %v294, %v291
        %v298 = vsub.f32 0.0, %v238
        %v299 = vsub.f32 0.0, %v239
        %v300 = vsub.f32 0.0, %v240
        %v301 = vsub.f32 0.0, %v241
        %v302 = vmax.f32 %v298, 0.0
        %v303 = vmax.f32 %v299, 0.0
        %v304 = vmax.f32 %v300, 0.0
        %v305 = vmax.f32 %v301, 0.0
        %v306 = vadd.f32 %v270, %v302
        %v307 = vadd.f32 %v279, %v303
        %v308 = vadd.f32 %v288, %v304
        %v309 = vadd.f32 %v297, %v305
        %v310 = vsub.f32 1.0, %v242
        %v311 = vsub.f32 1.0, %v243
        %v312 = vsub.f32 1.0, %v244
        %v313 = vsub.f32 1.0, %v245
        %v314 = vmul.f32 %v310, %v238
        %v315 = vmul.f32 %v311, %v239
        %v316 = vmul.f32 %v312, %v240
        %v317 = vmul.f32 %v313, %v241
        %v318 = vmul.f32 %v242, %v306
        %v319 = vmul.f32 %v243, %v307
        %v320 = vmul.f32 %v244, %v308
        %v321 = vmul.f32 %v245, %v309
        %s322 = sadd.s32 %s26, %s27
        %s323 = smul.u32 %s322, 8
        %v324 = vlaneseq
        %v325 = vshrl.u32 %v324, 7
        %v326 = vstv %s323
        %v327 = vadd.s32 %v325, %v326
        %v328 = vlaneseq
        %v329 = vand.u32 %v328, 127
        %v330 = vadd.s32 %v329, 128
        %v331 = vadd.s32 %v329, 256
        %v332 = vadd.s32 %v329, 384
        %vm333 = vcmp.lt.s32.totalorder %v327, 4
        %vm334 = vcmp.eq.s32.totalorder %v327, 4
        %vm335 = vcmp.lt.s32.totalorder %v329, 0
        %vm336 = vcmp.lt.s32.totalorder %v330, 0
        %vm337 = vcmp.lt.s32.totalorder %v331, 0
        %vm338 = vcmp.lt.s32.totalorder %v332, 0
        %vm339 = vmand %vm334, %vm335
        %vm340 = vmand %vm334, %vm336
        %vm341 = vmand %vm334, %vm337
        %vm342 = vmand %vm334, %vm338
        %vm343 = vmor %vm333, %vm339
        %vm344 = vmor %vm333, %vm340
        %vm345 = vmor %vm333, %vm341
        %vm346 = vmor %vm333, %vm342
        %v347 = vsel %vm343, %v306, 0.0
        %v348 = vsel %vm344, %v307, 0.0
        %v349 = vsel %vm345, %v308, 0.0
        %v350 = vsel %vm346, %v309, 0.0
        %v351 = vld [vmem:[%s215] sm:$0xff]
        %v352 = vld [vmem:[%s215 + $0x8] sm:$0xff]
        %v353 = vld [vmem:[%s215 + $0x10] sm:$0xff]
        %v354 = vld [vmem:[%s215 + $0x18] sm:$0xff]
        %v355 = vadd.f32 %v314, 0.0
        %v356 = vadd.f32 %v315, 0.0
        %v357 = vadd.f32 %v316, 0.0
        %v358 = vadd.f32 %v317, 0.0
        %v359 = vadd.f32 %v351, %v355
        %v360 = vadd.f32 %v352, %v356
        %v361 = vadd.f32 %v353, %v357
        %v362 = vadd.f32 %v354, %v358
        %363 = vst [vmem:[%s215] sm:$0xff] %v359
        %364 = vst [vmem:[%s215 + $0x8] sm:$0xff] %v360
        %365 = vst [vmem:[%s215 + $0x10] sm:$0xff] %v361
        %366 = vst [vmem:[%s215 + $0x18] sm:$0xff] %v362
        %s367 = scalar_lea.vmem %s215, 32 [#allocation7]
        %v368 = vld [vmem:[%s367] sm:$0xff]
        %v369 = vld [vmem:[%s367 + $0x8] sm:$0xff]
        %v370 = vld [vmem:[%s367 + $0x10] sm:$0xff]
        %v371 = vld [vmem:[%s367 + $0x18] sm:$0xff]
        %v372 = vadd.f32 %v347, 0.0
        %v373 = vadd.f32 %v348, 0.0
        %v374 = vadd.f32 %v349, 0.0
        %v375 = vadd.f32 %v350, 0.0
        %v376 = vadd.f32 %v368, %v372
        %v377 = vadd.f32 %v369, %v373
        %v378 = vadd.f32 %v370, %v374
        %v379 = vadd.f32 %v371, %v375
        %380 = vst [vmem:[%s367] sm:$0xff] %v376
        %381 = vst [vmem:[%s367 + $0x8] sm:$0xff] %v377
        %382 = vst [vmem:[%s367 + $0x10] sm:$0xff] %v378
        %383 = vst [vmem:[%s367 + $0x18] sm:$0xff] %v379
        %s384 = scalar_lea.vmem %s215, 64 [#allocation7]
        %v385 = vld [vmem:[%s384] sm:$0xff]
        %v386 = vld [vmem:[%s384 + $0x8] sm:$0xff]
        %v387 = vld [vmem:[%s384 + $0x10] sm:$0xff]
        %v388 = vld [vmem:[%s384 + $0x18] sm:$0xff]
        %v389 = vadd.f32 %v318, 0.0
        %v390 = vadd.f32 %v319, 0.0
        %v391 = vadd.f32 %v320, 0.0
        %v392 = vadd.f32 %v321, 0.0
        %v393 = vadd.f32 %v385, %v389
        %v394 = vadd.f32 %v386, %v390
        %v395 = vadd.f32 %v387, %v391
        %v396 = vadd.f32 %v388, %v392
        %397 = vst [vmem:[%s384] sm:$0xff] %v393
        %398 = vst [vmem:[%s384 + $0x8] sm:$0xff] %v394
        %399 = vst [vmem:[%s384 + $0x10] sm:$0xff] %v395
        %400 = vst [vmem:[%s384 + $0x18] sm:$0xff] %v396
        %s401 = scalar_lea.vmem %s215, 96 [#allocation7]
        %v402 = vld [vmem:[%s401] sm:$0xff]
        %v403 = vld [vmem:[%s401 + $0x8] sm:$0xff]
        %v404 = vld [vmem:[%s401 + $0x10] sm:$0xff]
        %v405 = vld [vmem:[%s401 + $0x18] sm:$0xff]
        %v406 = vadd.f32 %v242, 0.0
        %v407 = vadd.f32 %v243, 0.0
        %v408 = vadd.f32 %v244, 0.0
        %v409 = vadd.f32 %v245, 0.0
        %v410 = vadd.f32 %v402, %v406
        %v411 = vadd.f32 %v403, %v407
        %v412 = vadd.f32 %v404, %v408
        %v413 = vadd.f32 %v405, %v409
        %414 = vst [vmem:[%s401] sm:$0xff] %v410
        %415 = vst [vmem:[%s401 + $0x8] sm:$0xff] %v411
        %416 = vst [vmem:[%s401 + $0x10] sm:$0xff] %v412
        %417 = vst [vmem:[%s401 + $0x18] sm:$0xff] %v413
        %s418 = sand.u32 %s98, 1
        %s419 = scalar_lea.sflag [#allocation4], %s418
        %s420 = sand.u32 %s98, 1
        %s421 = smul.addr %s420, 128
        %s422 = scalar_lea.vmem [#allocation7], %s421
        // Predicated region
        $region41: #{tpu_custom_call.1} parent=27 // pred_check
          %p423 = pneg %p108
        $region42: #{tpu_custom_call.1} parent=27 // pred_check_branch
          %425 = sbr.rel (%p423) target = $region44
        $region43: #{tpu_custom_call.1} parent=27 // pred_region
          %s427 = ssub.s32 2048, 2048
          %428 = vsyncadd %s419, %s427
          %s429 = smul.addr %s26, 16
          %s430 = smul.addr %s429, 128
          %s431 = scalar_lea.hbm %s2, %s430
          %s432 = sshll.u32 %s422, 4
          %s433 = int_to_ptr.vmem [resolvable:$true] %s432
          %438 = dma.vmem_to_hbm [thread:$0]  %s433, 2048, %s431, %s419, 512, 512, 32
        $region44: #{tpu_custom_call.1} parent=27 // pred_fallthru
          _
      $region28: #{tpu_custom_call.1} parent=5 // pred_fallthru
        _
      %p439 = scmp.le.s32.totalorder 2, %s17
      // Predicated region
      $region45: #{tpu_custom_call.1} parent=5 // pred_check
        %p440 = pneg %p439
      $region46: #{tpu_custom_call.1} parent=5 // pred_check_branch
        %442 = sbr.rel (%p440) target = $region48
      $region47: #{tpu_custom_call.1} parent=5 // pred_region
        %s443 = ssub.s32 %s17, 2
        // Predicated region
        $region49: #{tpu_custom_call.1} parent=47 // pred_check
          %p444 = pneg %p114
        $region50: #{tpu_custom_call.1} parent=47 // pred_check_branch
          %446 = sbr.rel (%p444) target = $region52
        $region51: #{tpu_custom_call.1} parent=47 // pred_region
          %s447 = sand.u32 %s99, 1
          %s448 = scalar_lea.sflag [#allocation4], %s447
          %s449 = sand.u32 %s99, 1
          %s450 = smul.addr %s449, 128
          %s451 = scalar_lea.vmem [#allocation7], %s450
          %452 = dma.done %s448, 2048
        $region52: #{tpu_custom_call.1} parent=47 // pred_fallthru
          _
      $region48: #{tpu_custom_call.1} parent=5 // pred_fallthru
        _
    $region6: #{tpu_custom_call.1} parent=1 // loop_footer
      %s21 = sadd.s32 1, %s17
    $region7: #{tpu_custom_call.1} parent=1 // loop_footer_branch
      %16 = sbr.rel target = $region3
    $region8: #{tpu_custom_call.1} parent=1 // loop_exit
      _
    %453 = vsyncpa [#allocation3], 1
    %s454 = scalar_lea.sflag [#allocation3], 1
    %455 = vsyncpa %s454, 1
    %456 = vsyncpa [#allocation6], 1
    %s457 = scalar_lea.sflag [#allocation6], 1
    %458 = vsyncpa %s457, 1
    %459 = vsyncpa [#allocation4], 1
    %s460 = scalar_lea.sflag [#allocation4], 1
    %461 = vsyncpa %s460, 1

</llo_original>
